<compile_context>
chip_gen: v5e
topology: v5e:2x2
jax: 0.10.0
libtpu: 0.0.40
codegen_flags: <defaults>
</compile_context>

<pallas_src>
import functools

import jax
import jax.numpy as jnp
from jax.experimental import pallas as pl
from jax.experimental.pallas import tpu as pltpu


def _concat_pool_kernel(x_ref, out_ref, max_sc, sum_sc, *, hw, tk, inv_hw):
    k = pl.program_id(1)
    nk = pl.num_programs(1)

    @pl.when(k == 0)
    def _init():
        max_sc[...] = jnp.full(max_sc.shape, -jnp.inf, dtype=jnp.float32)
        sum_sc[...] = jnp.zeros(sum_sc.shape, dtype=jnp.float32)

    x = x_ref[...]                                   # (TM, TK) tile in VMEM

    if hw % tk != 0:
        # Mask out-of-bounds lanes of the last spatial tile (static branch).
        col = jax.lax.broadcasted_iota(jnp.int32, x.shape, 1) + k * tk
        valid = col < hw
        x_max = jnp.where(valid, x, jnp.asarray(-jnp.inf, dtype=x.dtype))
        x_sum = jnp.where(valid, x, jnp.asarray(0, dtype=x.dtype))
    else:
        x_max = x
        x_sum = x

    max_sc[...] = jnp.maximum(
        max_sc[...],
        jnp.max(x_max, axis=-1, keepdims=True).astype(jnp.float32))
    sum_sc[...] = sum_sc[...] + jnp.sum(
        x_sum.astype(jnp.float32), axis=-1, keepdims=True)

    @pl.when(k == nk - 1)
    def _finalize():
        out_ref[:, 0:1] = max_sc[...].astype(out_ref.dtype)
        out_ref[:, 1:2] = (sum_sc[...] * inv_hw).astype(out_ref.dtype)


# Per-input-tile VMEM budget (bytes). Double-buffered by the pipeline this stays
# well inside every generation's scoped VMEM (16 MiB v5e default, 32 MiB
# v6e/v7x default, 64 MiB v7x physical).
_TILE_BUDGET_BYTES = 6 * 1024 * 1024


def _choose_tiles(rows, hw, itemsize):
    budget = _TILE_BUDGET_BYTES
    # Spatial (lane) tile: whole row if even a minimal 8-row slab fits,
    # otherwise a 128-aligned chunk.
    if 8 * hw * itemsize <= budget:
        tk = hw
    else:
        tk = max(128, (budget // (8 * itemsize)) // 128 * 128)

    # Row (sublane) tile.
    max_tm = budget // max(1, tk * itemsize)
    if max_tm < 128 and rows > max_tm:
        # Row tiling needs 128-aligned row tiles (output block alignment);
        # shrink the spatial tile so 128 rows fit the budget.
        tk = max(128, (budget // (128 * itemsize)) // 128 * 128)
        max_tm = max(128, budget // (tk * itemsize))

    if rows <= max_tm and rows <= 4096:
        tm = rows                          # small problem: single row tile
    else:
        tm = max(128, min(max_tm, 4096) // 128 * 128)
    return tm, tk


def adaptive_concat_pool2d(x):
    """torch AdaptiveConcatPool2d(size=(1,1)): (N,C,H,W) -> (N,2C,1,1)."""
    N, C, H, W = x.shape
    rows = N * C
    hw = H * W
    itemsize = jnp.dtype(x.dtype).itemsize
    x2d = x.reshape(rows, hw)

    tm, tk = _choose_tiles(rows, hw, itemsize)
    grid = (pl.cdiv(rows, tm), pl.cdiv(hw, tk))

    kernel = functools.partial(
        _concat_pool_kernel, hw=hw, tk=tk, inv_hw=float(1.0 / hw))

    cost = pl.CostEstimate(
        flops=2 * rows * hw,                 # one max-cmp + one add per element
        transcendentals=0,
        bytes_accessed=rows * hw * itemsize + 2 * rows * itemsize)

    pooled = pl.pallas_call(
        kernel,
        out_shape=jax.ShapeDtypeStruct((rows, 2), x.dtype),
        grid_spec=pltpu.PrefetchScalarGridSpec(
            num_scalar_prefetch=0,
            grid=grid,
            in_specs=[pl.BlockSpec((tm, tk), lambda i, k: (i, k))],
            out_specs=pl.BlockSpec((tm, 2), lambda i, k: (i, 0)),
            scratch_shapes=[pltpu.VMEM((tm, 1), jnp.float32),
                            pltpu.VMEM((tm, 1), jnp.float32)]),
        compiler_params=pltpu.CompilerParams(
            dimension_semantics=("parallel", "arbitrary"),
            vmem_limit_bytes=32 * 1024 * 1024),
        cost_estimate=cost,
    )(x2d)

    # (rows, 2) -> (N, C, 2) -> (N, 2, C) -> (N, 2C, 1, 1); max channels first,
    # then avg channels, matching torch.cat([maxPooling(x), avgPooling(x)], 1).
    pooled = pooled.reshape(N, C, 2).transpose(0, 2, 1)
    return pooled.reshape(N, 2 * C, 1, 1)


if __name__ == "__main__":
    key = jax.random.PRNGKey(0)
    x = jax.random.normal(key, (2, 4, 16, 16), dtype=jnp.float32)

    out = adaptive_concat_pool2d(x)
    out = jax.block_until_ready(out)

    ref = jnp.concatenate(
        [jnp.max(x, axis=(2, 3), keepdims=True),
         jnp.mean(x, axis=(2, 3), keepdims=True)],
        axis=1,
    )
    assert out.shape == (2, 8, 1, 1), out.shape
    assert jnp.allclose(out, ref, atol=1e-5, rtol=1e-5)

    print("KERNEL_OK")
</pallas_src>

<mosaic_0001>
module attributes {stable_mosaic.version = 11 : i64} {
  func.func @_concat_pool_kernel(%arg0: i32, %arg1: i32, %arg2: memref<8x256xf32, #tpu.memory_space<vmem>>, %arg3: memref<8x2xf32, #tpu.memory_space<vmem>>, %arg4: memref<8x1xf32, #tpu.memory_space<vmem>>, %arg5: memref<8x1xf32, #tpu.memory_space<vmem>>) attributes {dimension_semantics = [#tpu.dimension_semantics<parallel>, #tpu.dimension_semantics<arbitrary>], iteration_bounds = array<i64: 1, 1>, scalar_prefetch = 0 : i64, scratch_operands = 2 : i64, tpu.core_type = #tpu.core_type<tc>, window_params = [{transform_indices = @transform_0, window_bounds = array<i64: 8, 256>}, {transform_indices = @transform_1, window_bounds = array<i64: 8, 2>}]} {
    %c0_i32 = arith.constant 0 : i32
    %0 = arith.cmpi eq, %arg1, %c0_i32 : i32
    %1 = arith.extui %0 : i1 to i32
    %c0_i32_0 = arith.constant 0 : i32
    %2 = arith.cmpi ne, %1, %c0_i32_0 : i32
    scf.if %2 {
      %cst_13 = arith.constant 0xFF800000 : f32
      %17 = vector.broadcast %cst_13 : f32 to vector<8x1xf32>
      %c0_14 = arith.constant 0 : index
      %c0_15 = arith.constant 0 : index
      %18 = vector.load %arg4[%c0_14, %c0_15] : memref<8x1xf32, #tpu.memory_space<vmem>>, vector<8x1xf32>
      tpu.vector_store %arg4[%c0_14, %c0_15], %17 {strides = array<i32>} : memref<8x1xf32, #tpu.memory_space<vmem>>, vector<8x1xf32>,
      %cst_16 = arith.constant 0.000000e+00 : f32
      %19 = vector.broadcast %cst_16 : f32 to vector<8x1xf32>
      %c0_17 = arith.constant 0 : index
      %c0_18 = arith.constant 0 : index
      %20 = vector.load %arg5[%c0_17, %c0_18] : memref<8x1xf32, #tpu.memory_space<vmem>>, vector<8x1xf32>
      tpu.vector_store %arg5[%c0_17, %c0_18], %19 {strides = array<i32>} : memref<8x1xf32, #tpu.memory_space<vmem>>, vector<8x1xf32>,
    } else {
    }
    %c0 = arith.constant 0 : index
    %c0_1 = arith.constant 0 : index
    %3 = vector.load %arg2[%c0, %c0_1] : memref<8x256xf32, #tpu.memory_space<vmem>>, vector<8x256xf32>
    %c0_2 = arith.constant 0 : index
    %c0_3 = arith.constant 0 : index
    %4 = vector.load %arg4[%c0_2, %c0_3] : memref<8x1xf32, #tpu.memory_space<vmem>>, vector<8x1xf32>
    %cst = arith.constant dense<0xFF800000> : vector<8xf32>
    %5 = vector.multi_reduction <maximumf>, %3, %cst [1] : vector<8x256xf32> to vector<8xf32>
    %6 = vector.shape_cast %5 : vector<8xf32> to vector<8x1xf32>
    %7 = arith.maximumf %4, %6 : vector<8x1xf32>
    %c0_4 = arith.constant 0 : index
    %c0_5 = arith.constant 0 : index
    %8 = vector.load %arg4[%c0_4, %c0_5] : memref<8x1xf32, #tpu.memory_space<vmem>>, vector<8x1xf32>
    tpu.vector_store %arg4[%c0_4, %c0_5], %7 {strides = array<i32>} : memref<8x1xf32, #tpu.memory_space<vmem>>, vector<8x1xf32>,
    %c0_6 = arith.constant 0 : index
    %c0_7 = arith.constant 0 : index
    %9 = vector.load %arg5[%c0_6, %c0_7] : memref<8x1xf32, #tpu.memory_space<vmem>>, vector<8x1xf32>
    %cst_8 = arith.constant dense<0.000000e+00> : vector<8xf32>
    %10 = vector.multi_reduction <add>, %3, %cst_8 [1] : vector<8x256xf32> to vector<8xf32>
    %11 = vector.shape_cast %10 : vector<8xf32> to vector<8x1xf32>
    %12 = arith.addf %9, %11 : vector<8x1xf32>
    %c0_9 = arith.constant 0 : index
    %c0_10 = arith.constant 0 : index
    %13 = vector.load %arg5[%c0_9, %c0_10] : memref<8x1xf32, #tpu.memory_space<vmem>>, vector<8x1xf32>
    tpu.vector_store %arg5[%c0_9, %c0_10], %12 {strides = array<i32>} : memref<8x1xf32, #tpu.memory_space<vmem>>, vector<8x1xf32>,
    %c0_i32_11 = arith.constant 0 : i32
    %14 = arith.cmpi eq, %arg1, %c0_i32_11 : i32
    %15 = arith.extui %14 : i1 to i32
    %c0_i32_12 = arith.constant 0 : i32
    %16 = arith.cmpi ne, %15, %c0_i32_12 : i32
    scf.if %16 {
      %c0_13 = arith.constant 0 : index
      %c0_14 = arith.constant 0 : index
      %17 = vector.load %arg4[%c0_13, %c0_14] : memref<8x1xf32, #tpu.memory_space<vmem>>, vector<8x1xf32>
      %c0_15 = arith.constant 0 : index
      %c0_16 = arith.constant 0 : index
      %18 = vector.load %arg3[%c0_15, %c0_16] : memref<8x2xf32, #tpu.memory_space<vmem>>, vector<8x1xf32>
      tpu.vector_store %arg3[%c0_15, %c0_16], %17 {strides = array<i32>} : memref<8x2xf32, #tpu.memory_space<vmem>>, vector<8x1xf32>,
      %c0_17 = arith.constant 0 : index
      %c0_18 = arith.constant 0 : index
      %19 = vector.load %arg5[%c0_17, %c0_18] : memref<8x1xf32, #tpu.memory_space<vmem>>, vector<8x1xf32>
      %cst_19 = arith.constant 3.906250e-03 : f32
      %20 = vector.broadcast %cst_19 : f32 to vector<8x1xf32>
      %21 = arith.mulf %19, %20 : vector<8x1xf32>
      %c0_20 = arith.constant 0 : index
      %c1 = arith.constant 1 : index
      %22 = vector.load %arg3[%c0_20, %c1] : memref<8x2xf32, #tpu.memory_space<vmem>>, vector<8x1xf32>
      tpu.vector_store %arg3[%c0_20, %c1], %21 {strides = array<i32>} : memref<8x2xf32, #tpu.memory_space<vmem>>, vector<8x1xf32>,
    } else {
    }
    return
  }
  func.func @transform_0(%arg0: i32, %arg1: i32) -> (i32, i32) {
    %c0_i32 = arith.constant 0 : i32
    return %arg0, %arg1 : i32, i32
  }
  func.func @transform_1(%arg0: i32, %arg1: i32) -> (i32, i32) {
    %c0_i32 = arith.constant 0 : i32
    %c0_i32_0 = arith.constant 0 : i32
    return %arg0, %c0_i32 : i32, i32
  }
}

</mosaic_0001>

<llo_original>
// kernel: tpu_custom_call.1
$region0: #{tpu_custom_call.1}
  #allocation0 [shape = 'u32[]', space=smem, size = 0x4, offset = 0x4, fixed_abs, tag = 'smem constant byte address 0x4 - core index']
  #allocation1 [shape = 'u32[72,128]{1,0:T(1,128)}', space=vmem, size = 0x9000, scoped, tag = 'internal scratch']
  #allocation2 [shape = 'f32[8,1]{1,0:T(8,128)}', space=vmem, size = 0x1000, scoped, tag = 'scratch operand']
  #allocation3 [shape = 'f32[8,1]{1,0:T(8,128)}', space=vmem, size = 0x1000, scoped, tag = 'scratch operand']
  %s0 = inlined_call_operand.hbm [shape: f32[8,256], index: 0, kind: input, shape index: {}]
  %s1 = inlined_call_operand.vmem [shape: f32[8,2], index: 1, kind: output, shape index: {}]
  %s2 = sld [smem:[#allocation0]]
  $region26: #{tpu_custom_call.1} parent=0
    _
  %s4 = ssub.s32 1, %s2
  %s5 = scalar_select 0, %s4, %s2
  $region1: #{tpu_custom_call.1} parent=0
    #allocation4 [shape = 'u8[8192]{0}', space=vmem, size = 0x2000, scoped, tag = 'input window, operand 0, single buffered']
    #allocation5 [shape = 's32[1]{0}', space=sflag, size = 0x4, scoped, tag = 'scoped memory for tpu_custom_call.1']
    %6 = vsyncpa [#allocation5], 0
    // Predicated region
    $region2: #{tpu_custom_call.1} parent=1 // pred_check
      _
    $region3: #{tpu_custom_call.1} parent=1 // pred_check_branch
      %8 = sbr.rel (0) target = $region5
    $region4: #{tpu_custom_call.1} parent=1 // pred_region
      %10 = vsyncadd [#allocation5], 0
      %s12 = sshll.u32 %s0, 4
      %s13 = int_to_ptr.hbm [resolvable:$true] %s12
      %s14 = sshll.u32 [#allocation4], 4
      %s15 = int_to_ptr.vmem [resolvable:$true] %s14
      %17 = dma.hbm_to_vmem [thread:$0]  %s13, 256, %s15, [#allocation5]
    $region5: #{tpu_custom_call.1} parent=1 // pred_fallthru
      _
    // Predicated region
    $region6: #{tpu_custom_call.1} parent=1 // pred_check
      _
    $region7: #{tpu_custom_call.1} parent=1 // pred_check_branch
      %19 = sbr.rel (0) target = $region9
    $region8: #{tpu_custom_call.1} parent=1 // pred_region
      %21 = dma.done [#allocation5], 256
    $region9: #{tpu_custom_call.1} parent=1 // pred_fallthru
      _
    %p22 = scmp.eq.s32.totalorder 0, 0
    // Predicated region
    $region10: #{tpu_custom_call.1} parent=1 // pred_check
      %p23 = pneg %p22
    $region11: #{tpu_custom_call.1} parent=1 // pred_check_branch
      %25 = sbr.rel (%p23) target = $region13
    $region12: #{tpu_custom_call.1} parent=1 // pred_region
      %vm26 = vcmask 7168
      %27 = vst.msk [vmem:[#allocation2] sm:$0xff] %vm26, -inf
      %28 = vst.msk [vmem:[#allocation3] sm:$0xff] %vm26, 0.0
    $region13: #{tpu_custom_call.1} parent=1 // pred_fallthru
      _
    %v29 = vld [vmem:[#allocation4] sm:$0xff]
    %v30 = vld [vmem:[#allocation4 + $0x8] sm:$0xff]
    %v31 = vld [vmem:[#allocation2] sm:$0xff]
    %v32 = vmax.f32 %v29, %v30
    %33 = vmax.xlane.f32.xlu0 %v32
    %v34 = vpop.xlane.xlu0 %33
    %v35 = vmax.f32 %v31, %v34
    %vm36 = vcmask 7168
    %37 = vst.msk [vmem:[#allocation2] sm:$0xff] %vm36, %v35
    %v38 = vld [vmem:[#allocation3] sm:$0xff]
    %v39 = vadd.f32 %v29, %v30
    %40 = vadd.xlane.f32.xlu0 %v39
    %v41 = vpop.xlane.xlu0 %40
    %v42 = vadd.f32 %v38, %v41
    %43 = vst.msk [vmem:[#allocation3] sm:$0xff] %vm36, %v42
    // Predicated region
    $region14: #{tpu_custom_call.1} parent=1 // pred_check
      %p44 = pneg %p22
    $region15: #{tpu_custom_call.1} parent=1 // pred_check_branch
      %46 = sbr.rel (%p44) target = $region17
    $region16: #{tpu_custom_call.1} parent=1 // pred_region
      %v47 = vld [vmem:[#allocation2] sm:$0xff]
      %48 = vst.msk [vmem:[%s1] sm:$0xff] %vm36, %v47
      %v49 = vld [vmem:[#allocation3] sm:$0xff]
      %v50 = vmul.f32 %v49, 0.00390625
      %52 = vrot.lane.b32.xlu0 %v50, 1
      %v53 = vpop.permute.xlu0 %52
      %vm55 = vcmask 15368
      %56 = vst.msk [vmem:[%s1] sm:$0xff] %vm55, %v53
    $region17: #{tpu_custom_call.1} parent=1 // pred_fallthru
      _
    // Predicated region
    $region18: #{tpu_custom_call.1} parent=1 // pred_check
      _
    $region19: #{tpu_custom_call.1} parent=1 // pred_check_branch
      %58 = sbr.rel (0) target = $region21
    $region20: #{tpu_custom_call.1} parent=1 // pred_region
      _
    $region21: #{tpu_custom_call.1} parent=1 // pred_fallthru
      _
    // Predicated region
    $region22: #{tpu_custom_call.1} parent=1 // pred_check
      _
    $region23: #{tpu_custom_call.1} parent=1 // pred_check_branch
      %60 = sbr.rel (0) target = $region25
    $region24: #{tpu_custom_call.1} parent=1 // pred_region
      _
    $region25: #{tpu_custom_call.1} parent=1 // pred_fallthru
      _
    %61 = vsyncpa [#allocation5], 1

</llo_original>
